<compile_context>
chip_gen: v5e
topology: v5e:2x2
jax: 0.10.0
libtpu: 0.0.40
codegen_flags: <defaults>
</compile_context>

<pallas_src>
import functools

import jax
import jax.numpy as jnp
from jax.experimental import pallas as pl
from jax.experimental.pallas import tpu as pltpu


def _default_core_splits():
    """2-way batch split only on dual-TensorCore chips (v7x); 1 otherwise."""
    try:
        kind = jax.devices()[0].device_kind.lower()
    except Exception:
        return 1
    return 2 if "v7" in kind else 1


def _fair_loss_kernel(*refs, n_views, red_views, view_i, lane_i,
                      tiles_per_core, tile_rows, batch):
    """One (core, batch-tile) grid step: accumulate lane-dense partial sums.

    refs = (x_view_0 .. x_view_{n_views-1}, acc_ref)
      x_view_k : (TB, CW)  narrow 128-lane column window of x (deduplicated)
      acc_ref  : (8, CW) f32 resident accumulator (one block per core):
        row 2*n   : column sums of reduction window red_views[n]
        row 2*n+1 : column sums of (window * x[:, y_start + desire])
        remaining rows: zero padding.
    """
    x_views = refs[:n_views]
    acc_ref = refs[n_views]

    c = pl.program_id(0)
    t = pl.program_id(1)

    @pl.when(t == 0)
    def _zero():
        acc_ref[...] = jnp.zeros_like(acc_ref)

    tb, cw = x_views[0].shape
    row0 = (c * tiles_per_core + t) * tile_rows

    def _accumulate(masked):
        if masked:
            rows = row0 + jax.lax.broadcasted_iota(jnp.int32, (tb, 1), 0)
            valid = rows < batch                                   # (tb, 1)
            ic = jnp.where(valid, x_views[view_i][:, lane_i:lane_i + 1], 0.0)

            def get(v):
                # where(), not *0, so unspecified padding never reaches sums.
                return jnp.where(valid, x_views[v][...], 0.0)
        else:
            ic = x_views[view_i][:, lane_i:lane_i + 1]

            def get(v):
                return x_views[v][...]

        # Hoisted: a single lane broadcast of the desire column, reused below
        # (JAX does not CSE broadcast_in_dim).
        i_b = jnp.broadcast_to(ic, (tb, cw))

        parts = []
        for v in red_views:
            xw = get(v)
            parts.append(jnp.sum(xw, axis=0, keepdims=True))        # col sums
            parts.append(jnp.sum(xw * i_b, axis=0, keepdims=True))  # prod sums
        parts.append(jnp.zeros((8 - 2 * len(red_views), cw), jnp.float32))
        acc_ref[...] += jnp.concatenate(parts, axis=0)

    # Full tiles skip the (TB, CW) row-mask selects entirely; only the (at most
    # one per core) partial tile — or a fully-clamped overshoot tile — pays.
    is_full = row0 + tb <= batch

    @pl.when(is_full)
    def _full():
        _accumulate(masked=False)

    @pl.when(jnp.logical_not(is_full))
    def _partial():
        _accumulate(masked=True)


def _fair_loss_jnp(x, fake_pred, col_u, col_p, col_i, lamb):
    """Plain jnp fallback for tiny inputs (same math as the kernel path)."""
    prod_u = jnp.mean(x[:, col_u] * x[:, col_i])
    prod_p = jnp.mean(x[:, col_p] * x[:, col_i])
    return (-1.0 * lamb * (prod_u / jnp.sum(x[:, col_u])
                           - prod_p / jnp.sum(x[:, col_p]))
            - 1.0 * jnp.mean(fake_pred))


def fair_loss(x, fake_pred, *, s_start_index, y_start_index,
              underprivileged_index, privileged_index,
              undesire_index, desire_index, lambda_rate,
              batch_tile=8192, min_rows_for_pallas=2048,
              num_core_splits=None):
    """Scalar FairLoss.forward.  `undesire_index` is unused (as in the spec)."""
    del undesire_index
    x = jnp.asarray(x, jnp.float32)
    fake_pred = jnp.asarray(fake_pred, jnp.float32)
    assert x.ndim == 2
    B, D = x.shape
    lamb = float(lambda_rate)

    col_u = s_start_index + underprivileged_index
    col_p = s_start_index + privileged_index
    col_i = y_start_index + desire_index
    assert 0 <= col_u < D and 0 <= col_p < D and 0 <= col_i < D

    # mean(fake_pred) stays out of the kernel (trivial standalone reduction).
    mean_fp = jnp.mean(fake_pred)

    # Tiny problems: fixed pallas_call launch/DMA-setup overhead loses to the
    # XLA-fused reduction.
    if B < max(8, min_rows_for_pallas):
        return _fair_loss_jnp(x, fake_pred, col_u, col_p, col_i, lamb)

    # ---- Column windows (all static Python ints) -----------------------------
    CW = D if D <= 128 else 128
    cb_u, lane_u = divmod(col_u, CW)
    cb_p, lane_p = divmod(col_p, CW)
    cb_i, lane_i = divmod(col_i, CW)
    col_blocks = sorted({cb_u, cb_p, cb_i})              # 1..3 distinct windows
    view_of = {cb: v for v, cb in enumerate(col_blocks)}
    n_views = len(col_blocks)
    view_u, view_p, view_i = view_of[cb_u], view_of[cb_p], view_of[cb_i]
    # Only windows holding the under/privileged columns need reductions.
    red_views = (view_u,) if view_u == view_p else (view_u, view_p)

    # ---- Core split (megacore) & load-balanced batch tiling -------------------
    n_cores = int(num_core_splits) if num_core_splits is not None \
        else _default_core_splits()
    n_cores = max(1, min(n_cores, max(1, B // 8)))

    batch_tile = max(8, int(batch_tile))
    rows_per_core = pl.cdiv(B, n_cores)
    tiles_per_core = pl.cdiv(rows_per_core, batch_tile)
    if n_cores == 1 and tiles_per_core == 1:
        TB = B                                            # single full-extent tile
    else:
        TB = pl.cdiv(rows_per_core, tiles_per_core)       # balanced across cores
        TB = ((TB + 7) // 8) * 8                          # sublane multiple
        if TB > B:                                        # keep block within array
            TB = (B // 8) * 8
            tiles_per_core = pl.cdiv(rows_per_core, TB)
    last_block = (B - 1) // TB            # last block index touching real rows

    def _row_block(c, t):
        # Clamp so an overshoot step re-reads a valid block (its rows are
        # masked in-kernel, so it contributes exactly zero).
        return jnp.minimum(c * tiles_per_core + t, last_block)

    def _make_x_index_map(col_block):
        def _imap(c, t):
            return (_row_block(c, t), col_block)
        return _imap

    def _out_index_map(c, t):
        return (c, 0)

    in_specs = [pl.BlockSpec((TB, CW), _make_x_index_map(cb))
                for cb in col_blocks]
    out_spec = pl.BlockSpec((8, CW), _out_index_map)

    # Explicit VMEM budget: n_views double-buffered (TB, CW) f32 windows plus
    # headroom; capped so it always fits v7x's 64 MiB physical VMEM per TC.
    # TODO(synk): optionally sweep pipeline_mode=pl.Buffered(3) on the window
    # specs when D >> 128 (strided row DMA) if the extra buffers fit VMEM.
    window_bytes = n_views * 2 * TB * CW * 4
    vmem_limit = int(min(max(window_bytes + (4 << 20), 16 << 20), 56 << 20))

    kernel = functools.partial(
        _fair_loss_kernel,
        n_views=n_views, red_views=red_views, view_i=view_i, lane_i=lane_i,
        tiles_per_core=tiles_per_core, tile_rows=TB, batch=B)

    partials = pl.pallas_call(
        kernel,
        out_shape=jax.ShapeDtypeStruct((n_cores * 8, CW), jnp.float32),
        grid_spec=pltpu.PrefetchScalarGridSpec(
            num_scalar_prefetch=0,
            grid=(n_cores, tiles_per_core),
            in_specs=in_specs,
            out_specs=out_spec,
        ),
        compiler_params=pltpu.CompilerParams(
            dimension_semantics=("parallel", "arbitrary"),
            vmem_limit_bytes=vmem_limit),
    )(*([x] * n_views))

    # ---- Final scalar combine (outside the kernel) ----------------------------
    tot = partials.reshape(n_cores, 8, CW).sum(axis=0)            # (8, CW)
    pos_u = red_views.index(view_u)
    pos_p = red_views.index(view_p)
    sum_u = tot[2 * pos_u, lane_u]
    prod_u = tot[2 * pos_u + 1, lane_u]
    sum_p = tot[2 * pos_p, lane_p]
    prod_p = tot[2 * pos_p + 1, lane_p]
    return (-1.0 * lamb * ((prod_u / B) / sum_u - (prod_p / B) / sum_p)
            - 1.0 * mean_fp)


def _fair_loss_reference(x, fake_pred, *, s_start_index, y_start_index,
                         underprivileged_index, privileged_index,
                         undesire_index, desire_index, lambda_rate):
    """Direct transcription of the PyTorch forward (test oracle)."""
    x = jnp.asarray(x, jnp.float32)
    fake_pred = jnp.asarray(fake_pred, jnp.float32)
    G = x[:, s_start_index:s_start_index + 2]
    I = x[:, y_start_index:y_start_index + 2]
    return (-1.0 * lambda_rate *
            (jnp.mean(G[:, underprivileged_index] * I[:, desire_index]) /
             jnp.sum(x[:, s_start_index + underprivileged_index]) -
             jnp.mean(G[:, privileged_index] * I[:, desire_index]) /
             jnp.sum(x[:, s_start_index + privileged_index]))
            - 1.0 * jnp.mean(fake_pred))


if __name__ == "__main__":
    key = jax.random.PRNGKey(0)
    k1, k2, k3, k4, k5, k6 = jax.random.split(key, 6)

    # Case 1: small shapes, all needed columns in one lane window; auto core
    # split (1 on v5e/v6e, 2 on v7x).
    cfg1 = dict(s_start_index=2, y_start_index=10, underprivileged_index=0,
                privileged_index=1, undesire_index=0, desire_index=1,
                lambda_rate=0.5)
    B1, D1 = 64, 32
    x1 = jax.random.uniform(k1, (B1, D1), jnp.float32, minval=0.1, maxval=1.0)
    f1 = jax.random.normal(k2, (B1, 1), jnp.float32)
    out1 = jax.block_until_ready(
        fair_loss(x1, f1, min_rows_for_pallas=0, **cfg1))        # force Pallas
    ref1 = _fair_loss_reference(x1, f1, **cfg1)
    assert jnp.allclose(out1, ref1, rtol=1e-4, atol=1e-5), (out1, ref1)
    # Small-input jnp fallback path (default thresholds) should agree too.
    out1_fb = jax.block_until_ready(fair_loss(x1, f1, **cfg1))
    assert jnp.allclose(out1_fb, ref1, rtol=1e-4, atol=1e-5), (out1_fb, ref1)

    # Case 2: wide features (sensitive / target columns in different 128-lane
    # windows), batch not a multiple of the tile, forced 2-way core split ->
    # exercises window dedup, balanced split, index clamping, row masking.
    cfg2 = dict(s_start_index=5, y_start_index=300, underprivileged_index=1,
                privileged_index=0, undesire_index=1, desire_index=0,
                lambda_rate=1.25)
    B2, D2 = 300, 512
    x2 = jax.random.uniform(k3, (B2, D2), jnp.float32, minval=0.1, maxval=1.0)
    f2 = jax.random.normal(k4, (B2, 1), jnp.float32)
    out2 = jax.block_until_ready(
        fair_loss(x2, f2, batch_tile=128, min_rows_for_pallas=0,
                  num_core_splits=2, **cfg2))
    ref2 = _fair_loss_reference(x2, f2, **cfg2)
    assert jnp.allclose(out2, ref2, rtol=1e-4, atol=1e-5), (out2, ref2)

    # Case 3: under/privileged columns straddle two different 128-lane windows
    # (two reduction windows); the desire column shares a window with one.
    cfg3 = dict(s_start_index=127, y_start_index=200, underprivileged_index=0,
                privileged_index=1, undesire_index=0, desire_index=1,
                lambda_rate=0.75)
    B3, D3 = 500, 256
    x3 = jax.random.uniform(k5, (B3, D3), jnp.float32, minval=0.1, maxval=1.0)
    f3 = jax.random.normal(k6, (B3, 1), jnp.float32)
    out3 = jax.block_until_ready(
        fair_loss(x3, f3, batch_tile=256, min_rows_for_pallas=0, **cfg3))
    ref3 = _fair_loss_reference(x3, f3, **cfg3)
    assert jnp.allclose(out3, ref3, rtol=1e-4, atol=1e-5), (out3, ref3)

    print("KERNEL_OK")
</pallas_src>

<mosaic_0001>
module attributes {stable_mosaic.version = 11 : i64} {
  func.func @_fair_loss_kernel(%arg0: i32, %arg1: i32, %arg2: memref<64x32xf32, #tpu.memory_space<vmem>>, %arg3: memref<8x32xf32, #tpu.memory_space<vmem>>) attributes {dimension_semantics = [#tpu.dimension_semantics<parallel>, #tpu.dimension_semantics<arbitrary>], iteration_bounds = array<i64: 1, 1>, scalar_prefetch = 0 : i64, scratch_operands = 0 : i64, tpu.core_type = #tpu.core_type<tc>, window_params = [{transform_indices = @transform_0, window_bounds = array<i64: 64, 32>}, {transform_indices = @transform_1, window_bounds = array<i64: 8, 32>}]} {
    %c0_i32 = arith.constant 0 : i32
    %0 = arith.cmpi eq, %arg1, %c0_i32 : i32
    %1 = arith.extui %0 : i1 to i32
    %c0_i32_0 = arith.constant 0 : i32
    %2 = arith.cmpi ne, %1, %c0_i32_0 : i32
    scf.if %2 {
      %cst = arith.constant 0.000000e+00 : f32
      %13 = vector.broadcast %cst : f32 to vector<8x32xf32>
      %c0 = arith.constant 0 : index
      %c0_5 = arith.constant 0 : index
      %14 = vector.load %arg3[%c0, %c0_5] : memref<8x32xf32, #tpu.memory_space<vmem>>, vector<8x32xf32>
      tpu.vector_store %arg3[%c0, %c0_5], %13 {strides = array<i32>} : memref<8x32xf32, #tpu.memory_space<vmem>>, vector<8x32xf32>,
    } else {
    }
    %c1_i32 = arith.constant 1 : i32
    %3 = arith.muli %arg0, %c1_i32 : i32
    %4 = arith.addi %3, %arg1 : i32
    %c64_i32 = arith.constant 64 : i32
    %5 = arith.muli %4, %c64_i32 : i32
    %c64_i32_1 = arith.constant 64 : i32
    %6 = arith.addi %5, %c64_i32_1 : i32
    %c64_i32_2 = arith.constant 64 : i32
    %7 = arith.cmpi sle, %6, %c64_i32_2 : i32
    %8 = arith.extui %7 : i1 to i32
    %c0_i32_3 = arith.constant 0 : i32
    %9 = arith.cmpi ne, %8, %c0_i32_3 : i32
    scf.if %9 {
      %c0 = arith.constant 0 : index
      %c11 = arith.constant 11 : index
      %13 = vector.load %arg2[%c0, %c11] : memref<64x32xf32, #tpu.memory_space<vmem>>, vector<64x1xf32>
      %14 = vector.shape_cast %13 : vector<64x1xf32> to vector<64x1xf32>
      %15 = vector.broadcast %14 : vector<64x1xf32> to vector<64x32xf32>
      %c0_5 = arith.constant 0 : index
      %c0_6 = arith.constant 0 : index
      %16 = vector.load %arg2[%c0_5, %c0_6] : memref<64x32xf32, #tpu.memory_space<vmem>>, vector<64x32xf32>
      %cst = arith.constant dense<0.000000e+00> : vector<32xf32>
      %17 = vector.multi_reduction <add>, %16, %cst [0] : vector<64x32xf32> to vector<32xf32>
      %18 = vector.shape_cast %17 : vector<32xf32> to vector<1x32xf32>
      %19 = arith.mulf %16, %15 : vector<64x32xf32>
      %cst_7 = arith.constant dense<0.000000e+00> : vector<32xf32>
      %20 = vector.multi_reduction <add>, %19, %cst_7 [0] : vector<64x32xf32> to vector<32xf32>
      %21 = vector.shape_cast %20 : vector<32xf32> to vector<1x32xf32>
      %cst_8 = arith.constant 0.000000e+00 : f32
      %22 = vector.broadcast %cst_8 : f32 to vector<6x32xf32>
      %c0_9 = arith.constant 0 : index
      %c0_10 = arith.constant 0 : index
      %23 = vector.load %arg3[%c0_9, %c0_10] : memref<8x32xf32, #tpu.memory_space<vmem>>, vector<8x32xf32>
      %24 = tpu.concatenate %18, %21, %22 in 0 : vector<1x32xf32>, vector<1x32xf32>, vector<6x32xf32> -> vector<8x32xf32>
      %25 = arith.addf %23, %24 : vector<8x32xf32>
      %c0_11 = arith.constant 0 : index
      %c0_12 = arith.constant 0 : index
      %26 = vector.load %arg3[%c0_11, %c0_12] : memref<8x32xf32, #tpu.memory_space<vmem>>, vector<8x32xf32>
      tpu.vector_store %arg3[%c0_11, %c0_12], %25 {strides = array<i32>} : memref<8x32xf32, #tpu.memory_space<vmem>>, vector<8x32xf32>,
    } else {
    }
    %true = arith.constant true
    %10 = arith.xori %7, %true : i1
    %11 = arith.extui %10 : i1 to i32
    %c0_i32_4 = arith.constant 0 : i32
    %12 = arith.cmpi ne, %11, %c0_i32_4 : i32
    scf.if %12 {
      %13 = tpu.iota {dimensions = array<i32: 0>} : vector<64x1xi32>
      %14 = vector.broadcast %5 : i32 to vector<64x1xi32>
      %15 = arith.addi %14, %13 : vector<64x1xi32>
      %c64_i32_5 = arith.constant 64 : i32
      %16 = vector.broadcast %c64_i32_5 : i32 to vector<64x1xi32>
      %17 = arith.cmpi slt, %15, %16 : vector<64x1xi32>
      %c0 = arith.constant 0 : index
      %c11 = arith.constant 11 : index
      %18 = vector.load %arg2[%c0, %c11] : memref<64x32xf32, #tpu.memory_space<vmem>>, vector<64x1xf32>
      %cst = arith.constant 0.000000e+00 : f32
      %19 = vector.broadcast %cst : f32 to vector<64x1xf32>
      %20 = arith.select %17, %18, %19 : vector<64x1xi1>, vector<64x1xf32>
      %21 = vector.shape_cast %20 : vector<64x1xf32> to vector<64x1xf32>
      %22 = vector.broadcast %21 : vector<64x1xf32> to vector<64x32xf32>
      %c0_6 = arith.constant 0 : index
      %c0_7 = arith.constant 0 : index
      %23 = vector.load %arg2[%c0_6, %c0_7] : memref<64x32xf32, #tpu.memory_space<vmem>>, vector<64x32xf32>
      %cst_8 = arith.constant 0.000000e+00 : f32
      %24 = vector.shape_cast %17 : vector<64x1xi1> to vector<64x1xi1>
      %25 = vector.broadcast %24 : vector<64x1xi1> to vector<64x32xi1>
      %26 = vector.broadcast %cst_8 : f32 to vector<64x32xf32>
      %27 = arith.select %25, %23, %26 : vector<64x32xi1>, vector<64x32xf32>
      %cst_9 = arith.constant dense<0.000000e+00> : vector<32xf32>
      %28 = vector.multi_reduction <add>, %27, %cst_9 [0] : vector<64x32xf32> to vector<32xf32>
      %29 = vector.shape_cast %28 : vector<32xf32> to vector<1x32xf32>
      %30 = arith.mulf %27, %22 : vector<64x32xf32>
      %cst_10 = arith.constant dense<0.000000e+00> : vector<32xf32>
      %31 = vector.multi_reduction <add>, %30, %cst_10 [0] : vector<64x32xf32> to vector<32xf32>
      %32 = vector.shape_cast %31 : vector<32xf32> to vector<1x32xf32>
      %cst_11 = arith.constant 0.000000e+00 : f32
      %33 = vector.broadcast %cst_11 : f32 to vector<6x32xf32>
      %c0_12 = arith.constant 0 : index
      %c0_13 = arith.constant 0 : index
      %34 = vector.load %arg3[%c0_12, %c0_13] : memref<8x32xf32, #tpu.memory_space<vmem>>, vector<8x32xf32>
      %35 = tpu.concatenate %29, %32, %33 in 0 : vector<1x32xf32>, vector<1x32xf32>, vector<6x32xf32> -> vector<8x32xf32>
      %36 = arith.addf %34, %35 : vector<8x32xf32>
      %c0_14 = arith.constant 0 : index
      %c0_15 = arith.constant 0 : index
      %37 = vector.load %arg3[%c0_14, %c0_15] : memref<8x32xf32, #tpu.memory_space<vmem>>, vector<8x32xf32>
      tpu.vector_store %arg3[%c0_14, %c0_15], %36 {strides = array<i32>} : memref<8x32xf32, #tpu.memory_space<vmem>>, vector<8x32xf32>,
    } else {
    }
    return
  }
  func.func @transform_0(%arg0: i32, %arg1: i32) -> (i32, i32) {
    %c1_i32 = arith.constant 1 : i32
    %0 = arith.muli %arg0, %c1_i32 : i32
    %1 = arith.addi %0, %arg1 : i32
    %c0_i32 = arith.constant 0 : i32
    %2 = arith.minsi %1, %c0_i32 : i32
    %c0_i32_0 = arith.constant 0 : i32
    %c0_i32_1 = arith.constant 0 : i32
    return %2, %c0_i32_0 : i32, i32
  }
  func.func @transform_1(%arg0: i32, %arg1: i32) -> (i32, i32) {
    %c0_i32 = arith.constant 0 : i32
    %c0_i32_0 = arith.constant 0 : i32
    return %arg0, %c0_i32 : i32, i32
  }
}

</mosaic_0001>

<llo_original>
// kernel: tpu_custom_call.1
$region0: #{tpu_custom_call.1}
  #allocation0 [shape = 'u32[]', space=smem, size = 0x4, offset = 0x4, fixed_abs, tag = 'smem constant byte address 0x4 - core index']
  #allocation1 [shape = 'u32[72,128]{1,0:T(1,128)}', space=vmem, size = 0x9000, scoped, tag = 'internal scratch']
  %s0 = inlined_call_operand.vmem [shape: f32[64,32], index: 0, kind: input, shape index: {}]
  %s1 = inlined_call_operand.hbm [shape: f32[8,32], index: 1, kind: output, shape index: {}]
  %s2 = sld [smem:[#allocation0]]
  $region26: #{tpu_custom_call.1} parent=0
    _
  %s4 = ssub.s32 1, %s2
  %s5 = scalar_select 0, %s4, %s2
  $region1: #{tpu_custom_call.1} parent=0
    #allocation2 [shape = 'u8[4096]{0}', space=vmem, size = 0x1000, scoped, tag = 'output window, operand 0, single buffered']
    #allocation3 [shape = 's32[1]{0}', space=sflag, size = 0x4, scoped, tag = 'scoped memory for tpu_custom_call.1']
    %6 = vsyncpa [#allocation3], 0
    // Predicated region
    $region2: #{tpu_custom_call.1} parent=1 // pred_check
      _
    $region3: #{tpu_custom_call.1} parent=1 // pred_check_branch
      %8 = sbr.rel (0) target = $region5
    $region4: #{tpu_custom_call.1} parent=1 // pred_region
      %s9 = sadd.s32 0, 0
      %p10 = scmp.lt.s32.totalorder %s9, 0
      %s11 = scalar_select %p10, %s9, 0
      %s12 = smul.u32 8, %s11
      %p13 = scmp.lt.s32.totalorder %s12, 7
      %s14 = scalar_select %p13, %s12, 7
      %s15 = smul.addr %s14, 8
      %s16 = scalar_lea.vmem %s0, %s15
      %s17 = sadd.s32 0, 0
      %p18 = scmp.lt.s32.totalorder %s17, 0
      %s19 = scalar_select %p18, %s17, 0
      %s20 = smul.u32 8, %s19
    $region5: #{tpu_custom_call.1} parent=1 // pred_fallthru
      _
    %s21 = sadd.s32 0, 0
    %p22 = scmp.lt.s32.totalorder %s21, 0
    %s23 = scalar_select %p22, %s21, 0
    %s24 = smul.u32 8, %s23
    %p25 = scmp.lt.s32.totalorder %s24, 7
    %s26 = scalar_select %p25, %s24, 7
    %s27 = smul.addr %s26, 8
    %s28 = scalar_lea.vmem %s0, %s27
    %s29 = sadd.s32 0, 0
    %p30 = scmp.lt.s32.totalorder %s29, 0
    %s31 = scalar_select %p30, %s29, 0
    %s32 = smul.u32 8, %s31
    %p33 = scmp.lt.s32.totalorder %s32, 7
    %s34 = scalar_select %p33, %s32, 7
    %s35 = smul.addr %s34, 8
    %s36 = scalar_lea.vmem %s0, %s35
    %s37 = sadd.s32 0, 0
    %p38 = scmp.lt.s32.totalorder %s37, 0
    %s39 = scalar_select %p38, %s37, 0
    %s40 = smul.u32 8, %s39
    %p41 = scmp.eq.s32.totalorder 0, 0
    // Predicated region
    $region6: #{tpu_custom_call.1} parent=1 // pred_check
      %p42 = pneg %p41
    $region7: #{tpu_custom_call.1} parent=1 // pred_check_branch
      %44 = sbr.rel (%p42) target = $region9
    $region8: #{tpu_custom_call.1} parent=1 // pred_region
      %vm45 = vcmask 261120
      %46 = vst.msk [vmem:[#allocation2] sm:$0xff] %vm45, 0.0
    $region9: #{tpu_custom_call.1} parent=1 // pred_fallthru
      _
    %s47 = sadd.s32 0, 0
    %s48 = smul.u32 %s47, 64
    %s49 = sadd.s32 %s48, 64
    %p50 = scmp.le.s32.totalorder %s49, 64
    // Predicated region
    $region10: #{tpu_custom_call.1} parent=1 // pred_check
      %p51 = pneg %p50
    $region11: #{tpu_custom_call.1} parent=1 // pred_check_branch
      %53 = sbr.rel (%p51) target = $region13
    $region12: #{tpu_custom_call.1} parent=1 // pred_region
      %v54 = vld [vmem:[%s36] sm:$0xff]
      %v55 = vld [vmem:[%s36 + $0x8] sm:$0xff]
      %v56 = vld [vmem:[%s36 + $0x10] sm:$0xff]
      %v57 = vld [vmem:[%s36 + $0x18] sm:$0xff]
      %v58 = vld [vmem:[%s36 + $0x20] sm:$0xff]
      %v59 = vld [vmem:[%s36 + $0x28] sm:$0xff]
      %v60 = vld [vmem:[%s36 + $0x30] sm:$0xff]
      %v61 = vld [vmem:[%s36 + $0x38] sm:$0xff]
      %63 = vset.pattern.permute.xlu0 11
      %64 = vperm.xlu0 %63, %v54
      %v65 = vpop.permute.xlu0 %64
      %68 = vset.pattern.permute.xlu0 11
      %69 = vperm.xlu0 %68, %v55
      %v70 = vpop.permute.xlu0 %69
      %73 = vset.pattern.permute.xlu0 11
      %74 = vperm.xlu0 %73, %v56
      %v75 = vpop.permute.xlu0 %74
      %78 = vset.pattern.permute.xlu0 11
      %79 = vperm.xlu0 %78, %v57
      %v80 = vpop.permute.xlu0 %79
      %83 = vset.pattern.permute.xlu0 11
      %84 = vperm.xlu0 %83, %v58
      %v85 = vpop.permute.xlu0 %84
      %88 = vset.pattern.permute.xlu0 11
      %89 = vperm.xlu0 %88, %v59
      %v90 = vpop.permute.xlu0 %89
      %93 = vset.pattern.permute.xlu0 11
      %94 = vperm.xlu0 %93, %v60
      %v95 = vpop.permute.xlu0 %94
      %98 = vset.pattern.permute.xlu0 11
      %99 = vperm.xlu0 %98, %v61
      %v100 = vpop.permute.xlu0 %99
      %vm102 = vcmask 261120
      %v103 = vsel %vm102, %v54, 0.0
      %v104 = vsel %vm102, %v55, 0.0
      %v105 = vadd.f32 %v103, %v104
      %v106 = vsel %vm102, %v56, 0.0
      %v107 = vadd.f32 %v105, %v106
      %v108 = vsel %vm102, %v57, 0.0
      %v109 = vadd.f32 %v107, %v108
      %v110 = vsel %vm102, %v58, 0.0
      %v111 = vadd.f32 %v109, %v110
      %v112 = vsel %vm102, %v59, 0.0
      %v113 = vadd.f32 %v111, %v112
      %v114 = vsel %vm102, %v60, 0.0
      %v115 = vadd.f32 %v113, %v114
      %v116 = vsel %vm102, %v61, 0.0
      %v117 = vadd.f32 %v115, %v116
      %v118 = vrot.slane %v117, 4
      %v119 = vadd.f32 %v117, %v118
      %v120 = vrot.slane %v119, 2
      %v121 = vadd.f32 %v119, %v120
      %v122 = vrot.slane %v121, 1
      %v123 = vadd.f32 %v121, %v122
      %v124 = vmul.f32 %v54, %v65
      %v125 = vmul.f32 %v55, %v70
      %v126 = vmul.f32 %v56, %v75
      %v127 = vmul.f32 %v57, %v80
      %v128 = vmul.f32 %v58, %v85
      %v129 = vmul.f32 %v59, %v90
      %v130 = vmul.f32 %v60, %v95
      %v131 = vmul.f32 %v61, %v100
      %v132 = vsel %vm102, %v124, 0.0
      %v133 = vsel %vm102, %v125, 0.0
      %v134 = vadd.f32 %v132, %v133
      %v135 = vsel %vm102, %v126, 0.0
      %v136 = vadd.f32 %v134, %v135
      %v137 = vsel %vm102, %v127, 0.0
      %v138 = vadd.f32 %v136, %v137
      %v139 = vsel %vm102, %v128, 0.0
      %v140 = vadd.f32 %v138, %v139
      %v141 = vsel %vm102, %v129, 0.0
      %v142 = vadd.f32 %v140, %v141
      %v143 = vsel %vm102, %v130, 0.0
      %v144 = vadd.f32 %v142, %v143
      %v145 = vsel %vm102, %v131, 0.0
      %v146 = vadd.f32 %v144, %v145
      %v147 = vrot.slane %v146, 4
      %v148 = vadd.f32 %v146, %v147
      %v149 = vrot.slane %v148, 2
      %v150 = vadd.f32 %v148, %v149
      %v151 = vrot.slane %v150, 1
      %v152 = vadd.f32 %v150, %v151
      %v153 = vld [vmem:[#allocation2] sm:$0xff]
      %vm154 = vcmask 1040384
      %v155 = vsel %vm154, %v123, %v152
      %vm156 = vcmask 1041408
      %v157 = vsel %vm156, %v155, 0.0
      %v158 = vadd.f32 %v153, %v157
      %159 = vst.msk [vmem:[#allocation2] sm:$0xff] %vm102, %v158
    $region13: #{tpu_custom_call.1} parent=1 // pred_fallthru
      _
    %p160 = scmp.gt.s32.totalorder %s49, 64
    // Predicated region
    $region14: #{tpu_custom_call.1} parent=1 // pred_check
      %p161 = pneg %p160
    $region15: #{tpu_custom_call.1} parent=1 // pred_check_branch
      %163 = sbr.rel (%p161) target = $region17
    $region16: #{tpu_custom_call.1} parent=1 // pred_region
      %v164 = vlaneseq
      %v165 = vshrl.u32 %v164, 7
      %v166 = vadd.s32 %v165, 8
      %v167 = vadd.s32 %v165, 16
      %v168 = vadd.s32 %v165, 24
      %v169 = vadd.s32 %v165, 32
      %v170 = vadd.s32 %v165, 40
      %v171 = vadd.s32 %v165, 48
      %v172 = vadd.s32 %v165, 56
      %v173 = vstv %s48
      %v174 = vadd.s32 %v173, %v165
      %v175 = vadd.s32 %v173, %v166
      %v176 = vadd.s32 %v173, %v167
      %v177 = vadd.s32 %v173, %v168
      %v178 = vadd.s32 %v173, %v169
      %v179 = vadd.s32 %v173, %v170
      %v180 = vadd.s32 %v173, %v171
      %v181 = vadd.s32 %v173, %v172
      %vm182 = vcmp.lt.s32.totalorder %v174, 64
      %vm183 = vcmp.lt.s32.totalorder %v175, 64
      %vm184 = vcmp.lt.s32.totalorder %v176, 64
      %vm185 = vcmp.lt.s32.totalorder %v177, 64
      %vm186 = vcmp.lt.s32.totalorder %v178, 64
      %vm187 = vcmp.lt.s32.totalorder %v179, 64
      %vm188 = vcmp.lt.s32.totalorder %v180, 64
      %vm189 = vcmp.lt.s32.totalorder %v181, 64
      %v190 = vld [vmem:[%s36] sm:$0xff]
      %v191 = vld [vmem:[%s36 + $0x8] sm:$0xff]
      %v192 = vld [vmem:[%s36 + $0x10] sm:$0xff]
      %v193 = vld [vmem:[%s36 + $0x18] sm:$0xff]
      %v194 = vld [vmem:[%s36 + $0x20] sm:$0xff]
      %v195 = vld [vmem:[%s36 + $0x28] sm:$0xff]
      %v196 = vld [vmem:[%s36 + $0x30] sm:$0xff]
      %v197 = vld [vmem:[%s36 + $0x38] sm:$0xff]
      %v198 = vsel %vm182, %v190, 0.0
      %v199 = vsel %vm183, %v191, 0.0
      %v200 = vsel %vm184, %v192, 0.0
      %v201 = vsel %vm185, %v193, 0.0
      %v202 = vsel %vm186, %v194, 0.0
      %v203 = vsel %vm187, %v195, 0.0
      %v204 = vsel %vm188, %v196, 0.0
      %v205 = vsel %vm189, %v197, 0.0
      %207 = vset.pattern.permute.xlu0 11
      %208 = vperm.xlu0 %207, %v198
      %v209 = vpop.permute.xlu0 %208
      %212 = vset.pattern.permute.xlu0 11
      %213 = vperm.xlu0 %212, %v199
      %v214 = vpop.permute.xlu0 %213
      %217 = vset.pattern.permute.xlu0 11
      %218 = vperm.xlu0 %217, %v200
      %v219 = vpop.permute.xlu0 %218
      %222 = vset.pattern.permute.xlu0 11
      %223 = vperm.xlu0 %222, %v201
      %v224 = vpop.permute.xlu0 %223
      %227 = vset.pattern.permute.xlu0 11
      %228 = vperm.xlu0 %227, %v202
      %v229 = vpop.permute.xlu0 %228
      %232 = vset.pattern.permute.xlu0 11
      %233 = vperm.xlu0 %232, %v203
      %v234 = vpop.permute.xlu0 %233
      %237 = vset.pattern.permute.xlu0 11
      %238 = vperm.xlu0 %237, %v204
      %v239 = vpop.permute.xlu0 %238
      %242 = vset.pattern.permute.xlu0 11
      %243 = vperm.xlu0 %242, %v205
      %v244 = vpop.permute.xlu0 %243
      %v246 = vsel %vm182, 1, 0
      %v247 = vsel %vm183, 1, 0
      %v248 = vsel %vm184, 1, 0
      %v249 = vsel %vm185, 1, 0
      %v250 = vsel %vm186, 1, 0
      %v251 = vsel %vm187, 1, 0
      %v252 = vsel %vm188, 1, 0
      %v253 = vsel %vm189, 1, 0
      %vm254 = vcmp.eq.s32.totalorder %v246, 1
      %vm255 = vcmp.eq.s32.totalorder %v247, 1
      %vm256 = vcmp.eq.s32.totalorder %v248, 1
      %vm257 = vcmp.eq.s32.totalorder %v249, 1
      %vm258 = vcmp.eq.s32.totalorder %v250, 1
      %vm259 = vcmp.eq.s32.totalorder %v251, 1
      %vm260 = vcmp.eq.s32.totalorder %v252, 1
      %vm261 = vcmp.eq.s32.totalorder %v253, 1
      %v262 = vsel %vm254, %v190, 0.0
      %v263 = vsel %vm255, %v191, 0.0
      %v264 = vsel %vm256, %v192, 0.0
      %v265 = vsel %vm257, %v193, 0.0
      %v266 = vsel %vm258, %v194, 0.0
      %v267 = vsel %vm259, %v195, 0.0
      %v268 = vsel %vm260, %v196, 0.0
      %v269 = vsel %vm261, %v197, 0.0
      %vm270 = vcmask 261120
      %v271 = vsel %vm270, %v262, 0.0
      %v272 = vsel %vm270, %v263, 0.0
      %v273 = vadd.f32 %v271, %v272
      %v274 = vsel %vm270, %v264, 0.0
      %v275 = vadd.f32 %v273, %v274
      %v276 = vsel %vm270, %v265, 0.0
      %v277 = vadd.f32 %v275, %v276
      %v278 = vsel %vm270, %v266, 0.0
      %v279 = vadd.f32 %v277, %v278
      %v280 = vsel %vm270, %v267, 0.0
      %v281 = vadd.f32 %v279, %v280
      %v282 = vsel %vm270, %v268, 0.0
      %v283 = vadd.f32 %v281, %v282
      %v284 = vsel %vm270, %v269, 0.0
      %v285 = vadd.f32 %v283, %v284
      %v286 = vrot.slane %v285, 4
      %v287 = vadd.f32 %v285, %v286
      %v288 = vrot.slane %v287, 2
      %v289 = vadd.f32 %v287, %v288
      %v290 = vrot.slane %v289, 1
      %v291 = vadd.f32 %v289, %v290
      %v292 = vmul.f32 %v262, %v209
      %v293 = vmul.f32 %v263, %v214
      %v294 = vmul.f32 %v264, %v219
      %v295 = vmul.f32 %v265, %v224
      %v296 = vmul.f32 %v266, %v229
      %v297 = vmul.f32 %v267, %v234
      %v298 = vmul.f32 %v268, %v239
      %v299 = vmul.f32 %v269, %v244
      %v300 = vsel %vm270, %v292, 0.0
      %v301 = vsel %vm270, %v293, 0.0
      %v302 = vadd.f32 %v300, %v301
      %v303 = vsel %vm270, %v294, 0.0
      %v304 = vadd.f32 %v302, %v303
      %v305 = vsel %vm270, %v295, 0.0
      %v306 = vadd.f32 %v304, %v305
      %v307 = vsel %vm270, %v296, 0.0
      %v308 = vadd.f32 %v306, %v307
      %v309 = vsel %vm270, %v297, 0.0
      %v310 = vadd.f32 %v308, %v309
      %v311 = vsel %vm270, %v298, 0.0
      %v312 = vadd.f32 %v310, %v311
      %v313 = vsel %vm270, %v299, 0.0
      %v314 = vadd.f32 %v312, %v313
      %v315 = vrot.slane %v314, 4
      %v316 = vadd.f32 %v314, %v315
      %v317 = vrot.slane %v316, 2
      %v318 = vadd.f32 %v316, %v317
      %v319 = vrot.slane %v318, 1
      %v320 = vadd.f32 %v318, %v319
      %v321 = vld [vmem:[#allocation2] sm:$0xff]
      %vm322 = vcmask 1040384
      %v323 = vsel %vm322, %v291, %v320
      %vm324 = vcmask 1041408
      %v325 = vsel %vm324, %v323, 0.0
      %v326 = vadd.f32 %v321, %v325
      %327 = vst.msk [vmem:[#allocation2] sm:$0xff] %vm270, %v326
    $region17: #{tpu_custom_call.1} parent=1 // pred_fallthru
      _
    // Predicated region
    $region18: #{tpu_custom_call.1} parent=1 // pred_check
      _
    $region19: #{tpu_custom_call.1} parent=1 // pred_check_branch
      %329 = sbr.rel (0) target = $region21
    $region20: #{tpu_custom_call.1} parent=1 // pred_region
      %331 = vsyncadd [#allocation3], 0
      %s333 = sshll.u32 [#allocation2], 4
      %s334 = int_to_ptr.vmem [resolvable:$true] %s333
      %s335 = sshll.u32 %s1, 4
      %s336 = int_to_ptr.hbm [resolvable:$true] %s335
      %338 = dma.vmem_to_hbm [thread:$0]  %s334, 128, %s336, [#allocation3]
    $region21: #{tpu_custom_call.1} parent=1 // pred_fallthru
      _
    // Predicated region
    $region22: #{tpu_custom_call.1} parent=1 // pred_check
      _
    $region23: #{tpu_custom_call.1} parent=1 // pred_check_branch
      %340 = sbr.rel (0) target = $region25
    $region24: #{tpu_custom_call.1} parent=1 // pred_region
      %342 = dma.done [#allocation3], 128
    $region25: #{tpu_custom_call.1} parent=1 // pred_fallthru
      _
    %343 = vsyncpa [#allocation3], 1

</llo_original>
